<compile_context>
chip_gen: v7x
topology: tpu7x:2x2x1
jax: 0.10.0
libtpu: 0.0.40
codegen_flags: <defaults>
</compile_context>

<pallas_src>
import jax
import jax.numpy as jnp
from jax.experimental import pallas as pl
from jax.experimental.pallas import tpu as pltpu

LANE = 128      # vreg lane width; hidden dims padded to this
OUT_LANE = 16   # n_actions=12 padded to 16 lanes (narrow output store)
H1 = 48
H2 = 64


def _round_up(x, m):
    return (x + m - 1) // m * m


def dqn_kernel(x_ref, w1_ref, b1_ref, w2_ref, b2_ref, w3_ref, b3_ref, o_ref):
    # One batch tile per grid step; weights/biases are resident in VMEM.
    x = x_ref[...].astype(jnp.bfloat16)                                   # (TB, n_obs)
    h1 = jnp.dot(x, w1_ref[...], preferred_element_type=jnp.float32) + b1_ref[...]
    h1 = jnp.maximum(h1, 0.0).astype(jnp.bfloat16)                        # (TB, 128)
    h2 = jnp.dot(h1, w2_ref[...], preferred_element_type=jnp.float32) + b2_ref[...]
    h2 = jnp.maximum(h2, 0.0).astype(jnp.bfloat16)                        # (TB, 128)
    # Narrow (TB, 16) f32 store; real Q-values live in lanes [0, 12).
    o_ref[...] = jnp.dot(h2, w3_ref[...], preferred_element_type=jnp.float32) + b3_ref[...]


def init_params(key, n_observation, n_actions):
    """nn.Linear-style init (uniform +-1/sqrt(fan_in)), stored [in, out] f32."""
    def linear(k, fan_in, fan_out):
        kw, kb = jax.random.split(k)
        bound = 1.0 / jnp.sqrt(float(fan_in))
        w = jax.random.uniform(kw, (fan_in, fan_out), jnp.float32, -bound, bound)
        b = jax.random.uniform(kb, (1, fan_out), jnp.float32, -bound, bound)
        return w, b

    k1, k2, k3 = jax.random.split(key, 3)
    w1, b1 = linear(k1, n_observation, H1)
    w2, b2 = linear(k2, H1, H2)
    w3, b3 = linear(k3, H2, n_actions)
    return (w1, b1, w2, b2, w3, b3)


def pack_params(params):
    """Zero-pad weights/biases to lane-aligned shapes and cast matmul operands
    to bf16. Padded ROWS of w2/w3 are zero, so padded lanes of h1/h2 never leak
    into the real output lanes."""
    w1, b1, w2, b2, w3, b3 = params

    def pad2(a, rows, cols):
        return jnp.pad(a, ((0, rows - a.shape[0]), (0, cols - a.shape[1])))

    n_obs = w1.shape[0]
    w1p = pad2(w1, n_obs, LANE).astype(jnp.bfloat16)      # (n_obs, 128)
    w2p = pad2(w2, LANE, LANE).astype(jnp.bfloat16)       # (128, 128)
    w3p = pad2(w3, LANE, OUT_LANE).astype(jnp.bfloat16)   # (128, 16)
    b1p = pad2(b1, 1, LANE)                               # (1, 128) f32
    b2p = pad2(b2, 1, LANE)                               # (1, 128) f32
    b3p = pad2(b3, 1, OUT_LANE)                           # (1, 16)  f32
    return (w1p, b1p, w2p, b2p, w3p, b3p)


def _choose_tile(batch, max_tile=512):
    """Pick a 16-row-aligned batch tile so the grid has >=2 steps when the
    batch allows (pipelining + v7x 2-TC split), capped at max_tile rows."""
    padded_b = _round_up(batch, 16)
    if padded_b <= 16:
        return padded_b, padded_b
    tile = min(max_tile, _round_up(pl.cdiv(padded_b, 2), 16))
    padded_b = _round_up(padded_b, tile)
    return tile, padded_b


def dqn_forward(states, packed_params, n_actions=12, max_tile=512):
    """states: [B, n_obs] f32 -> Q-values [B, 3, 4] f32 (PyTorch view(-1, 3, 4))."""
    w1, b1, w2, b2, w3, b3 = packed_params
    B, n_obs = states.shape

    tile_b, padded_b = _choose_tile(B, max_tile)
    x = states
    if padded_b != B:
        x = jnp.pad(x, ((0, padded_b - B), (0, 0)))

    out = pl.pallas_call(
        dqn_kernel,
        out_shape=jax.ShapeDtypeStruct((padded_b, OUT_LANE), jnp.float32),
        grid_spec=pltpu.PrefetchScalarGridSpec(
            num_scalar_prefetch=0,
            grid=(padded_b // tile_b,),
            in_specs=[
                pl.BlockSpec((tile_b, n_obs), lambda i: (i, 0)),   # streamed f32 states
                pl.BlockSpec(w1.shape, lambda i: (0, 0)),          # resident weights
                pl.BlockSpec(b1.shape, lambda i: (0, 0)),
                pl.BlockSpec(w2.shape, lambda i: (0, 0)),
                pl.BlockSpec(b2.shape, lambda i: (0, 0)),
                pl.BlockSpec(w3.shape, lambda i: (0, 0)),
                pl.BlockSpec(b3.shape, lambda i: (0, 0)),
            ],
            out_specs=pl.BlockSpec((tile_b, OUT_LANE), lambda i: (i, 0)),
        ),
        compiler_params=pltpu.CompilerParams(
            # batch tiles are independent -> shard across v7x's 2 TensorCores
            dimension_semantics=("parallel",),
        ),
    )(x, w1, b1, w2, b2, w3, b3)

    q = out[:B, :n_actions]
    return q.reshape(-1, 3, 4)


def ref_forward(states, params):
    """Plain-JAX reference matching the kernel's numerics (bf16 operands, f32 acc)."""
    w1, b1, w2, b2, w3, b3 = params
    x = states.astype(jnp.bfloat16)
    h1 = jnp.dot(x, w1.astype(jnp.bfloat16), preferred_element_type=jnp.float32) + b1
    h1 = jnp.maximum(h1, 0.0).astype(jnp.bfloat16)
    h2 = jnp.dot(h1, w2.astype(jnp.bfloat16), preferred_element_type=jnp.float32) + b2
    h2 = jnp.maximum(h2, 0.0).astype(jnp.bfloat16)
    out = jnp.dot(h2, w3.astype(jnp.bfloat16), preferred_element_type=jnp.float32) + b3
    return out.reshape(-1, 3, 4)


if __name__ == "__main__":
    n_observation = 16
    n_actions = 12          # must be 12 so that view(-1, 3, 4) works

    key = jax.random.PRNGKey(0)
    k_params, k_s1, k_s2 = jax.random.split(key, 3)

    params = init_params(k_params, n_observation, n_actions)
    packed = pack_params(params)

    # 1) small acting-sized batch (single grid step, 16-row padded)
    states_small = jax.random.normal(k_s1, (2, n_observation), jnp.float32)
    q_small = jax.block_until_ready(dqn_forward(states_small, packed, n_actions))
    assert q_small.shape == (2, 3, 4)
    ref_small = ref_forward(states_small, params)
    assert jnp.allclose(q_small, ref_small, atol=1e-2, rtol=1e-2), (
        "max|diff|=" + str(float(jnp.max(jnp.abs(q_small - ref_small)))))

    # 2) replay-buffer-sized batch exercising >=2 grid steps + batch padding
    states_big = jax.random.normal(k_s2, (300, n_observation), jnp.float32)
    q_big = jax.block_until_ready(dqn_forward(states_big, packed, n_actions))
    assert q_big.shape == (300, 3, 4)
    ref_big = ref_forward(states_big, params)
    assert jnp.allclose(q_big, ref_big, atol=1e-2, rtol=1e-2), (
        "max|diff|=" + str(float(jnp.max(jnp.abs(q_big - ref_big)))))

    print("KERNEL_OK")
</pallas_src>

<mosaic_0001>
module attributes {stable_mosaic.version = 11 : i64} {
  func.func @dqn_kernel(%arg0: i32, %arg1: memref<16x16xf32, #tpu.memory_space<vmem>>, %arg2: memref<16x128xbf16, #tpu.memory_space<vmem>>, %arg3: memref<1x128xf32, #tpu.memory_space<vmem>>, %arg4: memref<128x128xbf16, #tpu.memory_space<vmem>>, %arg5: memref<1x128xf32, #tpu.memory_space<vmem>>, %arg6: memref<128x16xbf16, #tpu.memory_space<vmem>>, %arg7: memref<1x16xf32, #tpu.memory_space<vmem>>, %arg8: memref<16x16xf32, #tpu.memory_space<vmem>>) attributes {dimension_semantics = [#tpu.dimension_semantics<parallel>], iteration_bounds = array<i64: 1>, scalar_prefetch = 0 : i64, scratch_operands = 0 : i64, tpu.core_type = #tpu.core_type<tc>, window_params = [{transform_indices = @transform_0, window_bounds = array<i64: 16, 16>}, {pipeline_mode = #tpu.pipeline_mode<synchronous>, transform_indices = @transform_1, window_bounds = array<i64: 16, 128>}, {pipeline_mode = #tpu.pipeline_mode<synchronous>, transform_indices = @transform_2, window_bounds = array<i64: 1, 128>}, {pipeline_mode = #tpu.pipeline_mode<synchronous>, transform_indices = @transform_3, window_bounds = array<i64: 128, 128>}, {pipeline_mode = #tpu.pipeline_mode<synchronous>, transform_indices = @transform_4, window_bounds = array<i64: 1, 128>}, {pipeline_mode = #tpu.pipeline_mode<synchronous>, transform_indices = @transform_5, window_bounds = array<i64: 128, 16>}, {pipeline_mode = #tpu.pipeline_mode<synchronous>, transform_indices = @transform_6, window_bounds = array<i64: 1, 16>}, {transform_indices = @transform_7, window_bounds = array<i64: 16, 16>}]} {
    %c0 = arith.constant 0 : index
    %c0_0 = arith.constant 0 : index
    %0 = vector.load %arg1[%c0, %c0_0] : memref<16x16xf32, #tpu.memory_space<vmem>>, vector<16x16xf32>
    %1 = arith.truncf %0 : vector<16x16xf32> to vector<16x16xbf16>
    %c0_1 = arith.constant 0 : index
    %c0_2 = arith.constant 0 : index
    %2 = vector.load %arg2[%c0_1, %c0_2] : memref<16x128xbf16, #tpu.memory_space<vmem>>, vector<16x128xbf16>
    %cst = arith.constant dense<0.000000e+00> : vector<16x128xf32>
    %3 = tpu.matmul %1, %2, %cst {dimension_numbers = #tpu.dot_dimension_numbers<[1], [0], [0], [1], [0, 0, 1, 1], [], []>} : vector<16x16xbf16>, vector<16x128xbf16>, vector<16x128xf32> -> vector<16x128xf32>
    %c0_3 = arith.constant 0 : index
    %c0_4 = arith.constant 0 : index
    %4 = vector.load %arg3[%c0_3, %c0_4] : memref<1x128xf32, #tpu.memory_space<vmem>>, vector<1x128xf32>
    %5 = vector.broadcast %4 : vector<1x128xf32> to vector<16x128xf32>
    %6 = arith.addf %3, %5 : vector<16x128xf32>
    %cst_5 = arith.constant 0.000000e+00 : f32
    %7 = vector.broadcast %cst_5 : f32 to vector<16x128xf32>
    %8 = arith.maximumf %6, %7 : vector<16x128xf32>
    %9 = arith.truncf %8 : vector<16x128xf32> to vector<16x128xbf16>
    %c0_6 = arith.constant 0 : index
    %c0_7 = arith.constant 0 : index
    %10 = vector.load %arg4[%c0_6, %c0_7] : memref<128x128xbf16, #tpu.memory_space<vmem>>, vector<128x128xbf16>
    %cst_8 = arith.constant dense<0.000000e+00> : vector<16x128xf32>
    %11 = tpu.matmul %9, %10, %cst_8 {dimension_numbers = #tpu.dot_dimension_numbers<[1], [0], [0], [1], [0, 0, 1, 1], [], []>} : vector<16x128xbf16>, vector<128x128xbf16>, vector<16x128xf32> -> vector<16x128xf32>
    %c0_9 = arith.constant 0 : index
    %c0_10 = arith.constant 0 : index
    %12 = vector.load %arg5[%c0_9, %c0_10] : memref<1x128xf32, #tpu.memory_space<vmem>>, vector<1x128xf32>
    %13 = vector.broadcast %12 : vector<1x128xf32> to vector<16x128xf32>
    %14 = arith.addf %11, %13 : vector<16x128xf32>
    %cst_11 = arith.constant 0.000000e+00 : f32
    %15 = vector.broadcast %cst_11 : f32 to vector<16x128xf32>
    %16 = arith.maximumf %14, %15 : vector<16x128xf32>
    %17 = arith.truncf %16 : vector<16x128xf32> to vector<16x128xbf16>
    %c0_12 = arith.constant 0 : index
    %c0_13 = arith.constant 0 : index
    %18 = vector.load %arg6[%c0_12, %c0_13] : memref<128x16xbf16, #tpu.memory_space<vmem>>, vector<128x16xbf16>
    %cst_14 = arith.constant dense<0.000000e+00> : vector<16x16xf32>
    %19 = tpu.matmul %17, %18, %cst_14 {dimension_numbers = #tpu.dot_dimension_numbers<[1], [0], [0], [1], [0, 0, 1, 1], [], []>} : vector<16x128xbf16>, vector<128x16xbf16>, vector<16x16xf32> -> vector<16x16xf32>
    %c0_15 = arith.constant 0 : index
    %c0_16 = arith.constant 0 : index
    %20 = vector.load %arg7[%c0_15, %c0_16] : memref<1x16xf32, #tpu.memory_space<vmem>>, vector<1x16xf32>
    %21 = vector.broadcast %20 : vector<1x16xf32> to vector<16x16xf32>
    %22 = arith.addf %19, %21 : vector<16x16xf32>
    %c0_17 = arith.constant 0 : index
    %c0_18 = arith.constant 0 : index
    %23 = vector.load %arg8[%c0_17, %c0_18] : memref<16x16xf32, #tpu.memory_space<vmem>>, vector<16x16xf32>
    tpu.vector_store %arg8[%c0_17, %c0_18], %22 {strides = array<i32>} : memref<16x16xf32, #tpu.memory_space<vmem>>, vector<16x16xf32>,
    return
  }
  func.func @transform_0(%arg0: i32) -> (i32, i32) {
    %c0_i32 = arith.constant 0 : i32
    %c0_i32_0 = arith.constant 0 : i32
    return %arg0, %c0_i32 : i32, i32
  }
  func.func @transform_1(%arg0: i32) -> (i32, i32) {
    %c0_i32 = arith.constant 0 : i32
    %c0_i32_0 = arith.constant 0 : i32
    %c0_i32_1 = arith.constant 0 : i32
    return %c0_i32, %c0_i32_0 : i32, i32
  }
  func.func @transform_2(%arg0: i32) -> (i32, i32) {
    %c0_i32 = arith.constant 0 : i32
    %c0_i32_0 = arith.constant 0 : i32
    %c0_i32_1 = arith.constant 0 : i32
    return %c0_i32, %c0_i32_0 : i32, i32
  }
  func.func @transform_3(%arg0: i32) -> (i32, i32) {
    %c0_i32 = arith.constant 0 : i32
    %c0_i32_0 = arith.constant 0 : i32
    %c0_i32_1 = arith.constant 0 : i32
    return %c0_i32, %c0_i32_0 : i32, i32
  }
  func.func @transform_4(%arg0: i32) -> (i32, i32) {
    %c0_i32 = arith.constant 0 : i32
    %c0_i32_0 = arith.constant 0 : i32
    %c0_i32_1 = arith.constant 0 : i32
    return %c0_i32, %c0_i32_0 : i32, i32
  }
  func.func @transform_5(%arg0: i32) -> (i32, i32) {
    %c0_i32 = arith.constant 0 : i32
    %c0_i32_0 = arith.constant 0 : i32
    %c0_i32_1 = arith.constant 0 : i32
    return %c0_i32, %c0_i32_0 : i32, i32
  }
  func.func @transform_6(%arg0: i32) -> (i32, i32) {
    %c0_i32 = arith.constant 0 : i32
    %c0_i32_0 = arith.constant 0 : i32
    %c0_i32_1 = arith.constant 0 : i32
    return %c0_i32, %c0_i32_0 : i32, i32
  }
  func.func @transform_7(%arg0: i32) -> (i32, i32) {
    %c0_i32 = arith.constant 0 : i32
    %c0_i32_0 = arith.constant 0 : i32
    return %arg0, %c0_i32 : i32, i32
  }
}

</mosaic_0001>

<llo_original>
// kernel: tpu_custom_call.1
$region0: #{tpu_custom_call.1}
  #allocation0 [shape = 'u32[]', space=smem, size = 0x4, offset = 0x4, fixed_abs, tag = 'smem constant byte address 0x4 - core index']
  #allocation1 [shape = 'u32[144,128]{1,0:T(1,128)}', space=vmem, size = 0x12000, scoped, tag = 'internal scratch']
  %s0 = inlined_call_operand.vmem [shape: f32[16,16], index: 0, kind: input, shape index: {}]
  %s1 = inlined_call_operand.hbm [shape: bf16[16,128], index: 1, kind: input, shape index: {}]
  %s2 = inlined_call_operand.vmem [shape: f32[1,128], index: 2, kind: input, shape index: {}]
  %s3 = inlined_call_operand.vmem [shape: bf16[128,128], index: 3, kind: input, shape index: {}]
  %s4 = inlined_call_operand.vmem [shape: f32[1,128], index: 4, kind: input, shape index: {}]
  %s5 = inlined_call_operand.vmem [shape: bf16[128,16], index: 5, kind: input, shape index: {}]
  %s6 = inlined_call_operand.vmem [shape: f32[1,16], index: 6, kind: input, shape index: {}]
  %s7 = inlined_call_operand.hbm [shape: f32[16,16], index: 7, kind: output, shape index: {}]
  %s8 = sld [smem:[#allocation0]]
  $region42: #{tpu_custom_call.1} parent=0
    _
  %s10 = ssub.s32 1, %s8
  %s11 = scalar_select 0, %s10, %s8
  $region1: #{tpu_custom_call.1} parent=0
    #allocation2 [shape = 'u8[4096]{0}', space=vmem, size = 0x1000, scoped, tag = 'input window, operand 1, single buffered']
    #allocation3 [shape = 's32[1]{0}', space=sflag, size = 0x4, scoped, tag = 'scoped memory for tpu_custom_call.1']
    #allocation4 [shape = 's32[1]{0}', space=sflag, size = 0x4, scoped, tag = 'scoped memory for tpu_custom_call.1']
    #allocation5 [shape = 'u8[8192]{0}', space=vmem, size = 0x2000, scoped, tag = 'output window, operand 0, single buffered']
    %12 = vsyncpa [#allocation3], 0
    %13 = vsyncpa [#allocation4], 0
    // Predicated region
    $region2: #{tpu_custom_call.1} parent=1 // pred_check
      _
    $region3: #{tpu_custom_call.1} parent=1 // pred_check_branch
      %15 = sbr.rel (0) target = $region5
    $region4: #{tpu_custom_call.1} parent=1 // pred_region
      _
    $region5: #{tpu_custom_call.1} parent=1 // pred_fallthru
      _
    // Predicated region
    $region6: #{tpu_custom_call.1} parent=1 // pred_check
      _
    $region7: #{tpu_custom_call.1} parent=1 // pred_check_branch
      %17 = sbr.rel (0) target = $region9
    $region8: #{tpu_custom_call.1} parent=1 // pred_region
      %s19 = ssub.s32 128, 128
      %20 = vsyncadd [#allocation3], %s19
      %s21 = sshll.u32 [#allocation2], 4
      %s22 = int_to_ptr.vmem [resolvable:$true] %s21
      %27 = dma.hbm_to_vmem [thread:$0]  %s1, 128, %s22, [#allocation3], 64, 64, 4
    $region9: #{tpu_custom_call.1} parent=1 // pred_fallthru
      _
    // Predicated region
    $region10: #{tpu_custom_call.1} parent=1 // pred_check
      _
    $region11: #{tpu_custom_call.1} parent=1 // pred_check_branch
      %29 = sbr.rel (0) target = $region13
    $region12: #{tpu_custom_call.1} parent=1 // pred_region
      _
    $region13: #{tpu_custom_call.1} parent=1 // pred_fallthru
      _
    // Predicated region
    $region14: #{tpu_custom_call.1} parent=1 // pred_check
      _
    $region15: #{tpu_custom_call.1} parent=1 // pred_check_branch
      %31 = sbr.rel (0) target = $region17
    $region16: #{tpu_custom_call.1} parent=1 // pred_region
      _
    $region17: #{tpu_custom_call.1} parent=1 // pred_fallthru
      _
    // Predicated region
    $region18: #{tpu_custom_call.1} parent=1 // pred_check
      _
    $region19: #{tpu_custom_call.1} parent=1 // pred_check_branch
      %33 = sbr.rel (0) target = $region21
    $region20: #{tpu_custom_call.1} parent=1 // pred_region
      _
    $region21: #{tpu_custom_call.1} parent=1 // pred_fallthru
      _
    // Predicated region
    $region22: #{tpu_custom_call.1} parent=1 // pred_check
      _
    $region23: #{tpu_custom_call.1} parent=1 // pred_check_branch
      %35 = sbr.rel (0) target = $region25
    $region24: #{tpu_custom_call.1} parent=1 // pred_region
      _
    $region25: #{tpu_custom_call.1} parent=1 // pred_fallthru
      _
    // Predicated region
    $region26: #{tpu_custom_call.1} parent=1 // pred_check
      _
    $region27: #{tpu_custom_call.1} parent=1 // pred_check_branch
      %37 = sbr.rel (0) target = $region29
    $region28: #{tpu_custom_call.1} parent=1 // pred_region
      _
    $region29: #{tpu_custom_call.1} parent=1 // pred_fallthru
      _
    // Predicated region
    $region30: #{tpu_custom_call.1} parent=1 // pred_check
      _
    $region31: #{tpu_custom_call.1} parent=1 // pred_check_branch
      %39 = sbr.rel (0) target = $region33
    $region32: #{tpu_custom_call.1} parent=1 // pred_region
      %40 = dma.done [#allocation3], 128
    $region33: #{tpu_custom_call.1} parent=1 // pred_fallthru
      _
    %v42 = vld [vmem:[%s0] sm:$0xff]
    %v43 = vld [vmem:[%s0 + $0x8] sm:$0xff]
    %v44 = vpack.c.bf16 %v43, %v42
    %v45 = vld [vmem:[#allocation2] sm:$0xf]
    %v46 = vld [vmem:[#allocation2 + $0x4] sm:$0xf]
    %v47 = vld [vmem:[%s2] sm:$0x1]
    %v49 = vlaneseq
    %v50 = vshrl.u32 %v49, 7
    %v51 = vsub.s32 0, %v50
    %v52 = vrot.slane %v47, %v51
    %v56 = vunpack.c.l.b16 %v45
    %v57 = vunpack.c.l.b16 %v46
    %v58 = vpack.c.b16 %v57, %v56
    %vm60 = vcmask 130048
    %v62 = vsel %vm60, %v44, 0
    %64 = vmatprep.subr.bf16.mxu0 0
    %65 = vmatpush1.bf16.msra.mxu0 %v58
    %66 = vmatprep.subr.bf16.mxu0 0
    %67 = vmatpush1.bf16.msra.mxu0 0
    %68 = vmatprep.subr.bf16.mxu0 0
    %69 = vmatpush1.bf16.msra.mxu0 0
    %70 = vmatprep.subr.bf16.mxu0 0
    %71 = vmatpush1.bf16.msra.mxu0 0
    %72 = vmatprep.subr.bf16.mxu0 0
    %73 = vmatpush1.bf16.msra.mxu0 0
    %74 = vmatprep.subr.bf16.mxu0 0
    %75 = vmatpush1.bf16.msra.mxu0 0
    %76 = vmatprep.subr.bf16.mxu0 0
    %77 = vmatpush1.bf16.msra.mxu0 0
    %78 = vmatprep.subr.bf16.mxu0 0
    %79 = vmatpush1.bf16.msra.mxu0 0
    %80 = vmatprep.subr.bf16.mxu0 0
    %81 = vmatpush1.bf16.msra.mxu0 0
    %82 = vmatprep.subr.bf16.mxu0 0
    %83 = vmatpush1.bf16.msra.mxu0 0
    %84 = vmatprep.subr.bf16.mxu0 0
    %85 = vmatpush1.bf16.msra.mxu0 0
    %86 = vmatprep.subr.bf16.mxu0 0
    %87 = vmatpush1.bf16.msra.mxu0 0
    %88 = vmatprep.subr.bf16.mxu0 0
    %89 = vmatpush1.bf16.msra.mxu0 0
    %90 = vmatprep.subr.bf16.mxu0 0
    %91 = vmatpush1.bf16.msra.mxu0 0
    %92 = vmatprep.subr.bf16.mxu0 0
    %93 = vmatpush1.bf16.msra.mxu0 0
    %94 = vmatprep.subr.bf16.mxu0 0
    %95 = vmatpush1.bf16.msra.mxu0 0
    %96 = vmatprep.mubr.bf16.mxu0 0
    %97 = vmatmul.mubr.bf16.gmra.mrb[0].mxu0 %v62
    %v98 = vpop.f32.mrb[0].mxu0
    %v99 = vadd.f32 %v52, %v98
    %v100 = vpop.f32.mrb[0].mxu0
    %v101 = vpop.f32.mrb[0].mxu0
    %v102 = vadd.f32 %v52, %v101
    %v103 = vpop.f32.mrb[0].mxu0
    %104 = vdwg.mxu0
    %v105 = vmax.f32 %v99, 0.0
    %v106 = vmax.f32 %v102, 0.0
    %v107 = vpack.c.bf16 %v106, %v105
    %v108 = vld [vmem:[%s3] sm:$0xf]
    %v109 = vld [vmem:[%s3 + $0x4] sm:$0xf]
    %v110 = vld [vmem:[%s3 + $0x8] sm:$0xf]
    %v111 = vld [vmem:[%s3 + $0xc] sm:$0xf]
    %v112 = vld [vmem:[%s3 + $0x10] sm:$0xf]
    %v113 = vld [vmem:[%s3 + $0x14] sm:$0xf]
    %v114 = vld [vmem:[%s3 + $0x18] sm:$0xf]
    %v115 = vld [vmem:[%s3 + $0x1c] sm:$0xf]
    %v116 = vld [vmem:[%s3 + $0x20] sm:$0xf]
    %v117 = vld [vmem:[%s3 + $0x24] sm:$0xf]
    %v118 = vld [vmem:[%s3 + $0x28] sm:$0xf]
    %v119 = vld [vmem:[%s3 + $0x2c] sm:$0xf]
    %v120 = vld [vmem:[%s3 + $0x30] sm:$0xf]
    %v121 = vld [vmem:[%s3 + $0x34] sm:$0xf]
    %v122 = vld [vmem:[%s3 + $0x38] sm:$0xf]
    %v123 = vld [vmem:[%s3 + $0x3c] sm:$0xf]
    %v124 = vld [vmem:[%s4] sm:$0x1]
    %v126 = vlaneseq
    %v127 = vshrl.u32 %v126, 7
    %v128 = vsub.s32 0, %v127
    %v129 = vrot.slane %v124, %v128
    %v147 = vunpack.c.l.b16 %v108
    %v148 = vunpack.c.l.b16 %v109
    %v149 = vunpack.c.l.b16 %v110
    %v150 = vunpack.c.l.b16 %v111
    %v151 = vunpack.c.l.b16 %v112
    %v152 = vunpack.c.l.b16 %v113
    %v153 = vunpack.c.l.b16 %v114
    %v154 = vunpack.c.l.b16 %v115
    %v155 = vunpack.c.l.b16 %v116
    %v156 = vunpack.c.l.b16 %v117
    %v157 = vunpack.c.l.b16 %v118
    %v158 = vunpack.c.l.b16 %v119
    %v159 = vunpack.c.l.b16 %v120
    %v160 = vunpack.c.l.b16 %v121
    %v161 = vunpack.c.l.b16 %v122
    %v162 = vunpack.c.l.b16 %v123
    %v163 = vpack.c.b16 %v148, %v147
    %v164 = vpack.c.b16 %v150, %v149
    %v165 = vpack.c.b16 %v152, %v151
    %v166 = vpack.c.b16 %v154, %v153
    %v167 = vpack.c.b16 %v156, %v155
    %v168 = vpack.c.b16 %v158, %v157
    %v169 = vpack.c.b16 %v160, %v159
    %v170 = vpack.c.b16 %v162, %v161
    %179 = vmatprep.subr.bf16.mxu0 0
    %180 = vmatpush1.bf16.msra.mxu0 %v163
    %181 = vmatprep.subr.bf16.mxu0 0
    %182 = vmatpush1.bf16.msra.mxu0 %v164
    %183 = vmatprep.subr.bf16.mxu0 0
    %184 = vmatpush1.bf16.msra.mxu0 %v165
    %185 = vmatprep.subr.bf16.mxu0 0
    %186 = vmatpush1.bf16.msra.mxu0 %v166
    %187 = vmatprep.subr.bf16.mxu0 0
    %188 = vmatpush1.bf16.msra.mxu0 %v167
    %189 = vmatprep.subr.bf16.mxu0 0
    %190 = vmatpush1.bf16.msra.mxu0 %v168
    %191 = vmatprep.subr.bf16.mxu0 0
    %192 = vmatpush1.bf16.msra.mxu0 %v169
    %193 = vmatprep.subr.bf16.mxu0 0
    %194 = vmatpush1.bf16.msra.mxu0 %v170
    %195 = vmatprep.subr.bf16.mxu0 0
    %196 = vmatpush1.bf16.msra.mxu0 0
    %197 = vmatprep.subr.bf16.mxu0 0
    %198 = vmatpush1.bf16.msra.mxu0 0
    %199 = vmatprep.subr.bf16.mxu0 0
    %200 = vmatpush1.bf16.msra.mxu0 0
    %201 = vmatprep.subr.bf16.mxu0 0
    %202 = vmatpush1.bf16.msra.mxu0 0
    %203 = vmatprep.subr.bf16.mxu0 0
    %204 = vmatpush1.bf16.msra.mxu0 0
    %205 = vmatprep.subr.bf16.mxu0 0
    %206 = vmatpush1.bf16.msra.mxu0 0
    %207 = vmatprep.subr.bf16.mxu0 0
    %208 = vmatpush1.bf16.msra.mxu0 0
    %209 = vmatprep.subr.bf16.mxu0 0
    %210 = vmatpush1.bf16.msra.mxu0 0
    %211 = vmatprep.mubr.bf16.mxu0 0
    %212 = vmatmul.mubr.bf16.gmra.mrb[0].mxu0 %v107
    %v213 = vpop.f32.mrb[0].mxu0
    %v214 = vadd.f32 %v129, %v213
    %v215 = vpop.f32.mrb[0].mxu0
    %v216 = vpop.f32.mrb[0].mxu0
    %v217 = vadd.f32 %v129, %v216
    %v218 = vpop.f32.mrb[0].mxu0
    %219 = vdwg.mxu0
    %v220 = vmax.f32 %v214, 0.0
    %v221 = vmax.f32 %v217, 0.0
    %v222 = vpack.c.bf16 %v221, %v220
    %v223 = vld [vmem:[%s5] sm:$0xf]
    %v224 = vld [vmem:[%s5 + $0x4] sm:$0xf]
    %v225 = vld [vmem:[%s5 + $0x8] sm:$0xf]
    %v226 = vld [vmem:[%s5 + $0xc] sm:$0xf]
    %v227 = vld [vmem:[%s5 + $0x10] sm:$0xf]
    %v228 = vld [vmem:[%s5 + $0x14] sm:$0xf]
    %v229 = vld [vmem:[%s5 + $0x18] sm:$0xf]
    %v230 = vld [vmem:[%s5 + $0x1c] sm:$0xf]
    %v231 = vld [vmem:[%s5 + $0x20] sm:$0xf]
    %v232 = vld [vmem:[%s5 + $0x24] sm:$0xf]
    %v233 = vld [vmem:[%s5 + $0x28] sm:$0xf]
    %v234 = vld [vmem:[%s5 + $0x2c] sm:$0xf]
    %v235 = vld [vmem:[%s5 + $0x30] sm:$0xf]
    %v236 = vld [vmem:[%s5 + $0x34] sm:$0xf]
    %v237 = vld [vmem:[%s5 + $0x38] sm:$0xf]
    %v238 = vld [vmem:[%s5 + $0x3c] sm:$0xf]
    %v239 = vld [vmem:[%s6] sm:$0x1]
    %v241 = vlaneseq
    %v242 = vshrl.u32 %v241, 7
    %v243 = vsub.s32 0, %v242
    %v244 = vrot.slane %v239, %v243
    %v262 = vunpack.c.l.b16 %v223
    %v263 = vunpack.c.l.b16 %v224
    %v264 = vunpack.c.l.b16 %v225
    %v265 = vunpack.c.l.b16 %v226
    %v266 = vunpack.c.l.b16 %v227
    %v267 = vunpack.c.l.b16 %v228
    %v268 = vunpack.c.l.b16 %v229
    %v269 = vunpack.c.l.b16 %v230
    %v270 = vunpack.c.l.b16 %v231
    %v271 = vunpack.c.l.b16 %v232
    %v272 = vunpack.c.l.b16 %v233
    %v273 = vunpack.c.l.b16 %v234
    %v274 = vunpack.c.l.b16 %v235
    %v275 = vunpack.c.l.b16 %v236
    %v276 = vunpack.c.l.b16 %v237
    %v277 = vunpack.c.l.b16 %v238
    %v278 = vpack.c.b16 %v263, %v262
    %v279 = vpack.c.b16 %v265, %v264
    %v280 = vpack.c.b16 %v267, %v266
    %v281 = vpack.c.b16 %v269, %v268
    %v282 = vpack.c.b16 %v271, %v270
    %v283 = vpack.c.b16 %v273, %v272
    %v284 = vpack.c.b16 %v275, %v274
    %v285 = vpack.c.b16 %v277, %v276
    %294 = vmatprep.subr.bf16.mxu0 0
    %295 = vmatpush1.bf16.msra.mxu0 %v278
    %296 = vmatprep.subr.bf16.mxu0 0
    %297 = vmatpush1.bf16.msra.mxu0 %v279
    %298 = vmatprep.subr.bf16.mxu0 0
    %299 = vmatpush1.bf16.msra.mxu0 %v280
    %300 = vmatprep.subr.bf16.mxu0 0
    %301 = vmatpush1.bf16.msra.mxu0 %v281
    %302 = vmatprep.subr.bf16.mxu0 0
    %303 = vmatpush1.bf16.msra.mxu0 %v282
    %304 = vmatprep.subr.bf16.mxu0 0
    %305 = vmatpush1.bf16.msra.mxu0 %v283
    %306 = vmatprep.subr.bf16.mxu0 0
    %307 = vmatpush1.bf16.msra.mxu0 %v284
    %308 = vmatprep.subr.bf16.mxu0 0
    %309 = vmatpush1.bf16.msra.mxu0 %v285
    %310 = vmatprep.subr.bf16.mxu0 0
    %311 = vmatpush1.bf16.msra.mxu0 0
    %312 = vmatprep.subr.bf16.mxu0 0
    %313 = vmatpush1.bf16.msra.mxu0 0
    %314 = vmatprep.subr.bf16.mxu0 0
    %315 = vmatpush1.bf16.msra.mxu0 0
    %316 = vmatprep.subr.bf16.mxu0 0
    %317 = vmatpush1.bf16.msra.mxu0 0
    %318 = vmatprep.subr.bf16.mxu0 0
    %319 = vmatpush1.bf16.msra.mxu0 0
    %320 = vmatprep.subr.bf16.mxu0 0
    %321 = vmatpush1.bf16.msra.mxu0 0
    %322 = vmatprep.subr.bf16.mxu0 0
    %323 = vmatpush1.bf16.msra.mxu0 0
    %324 = vmatprep.subr.bf16.mxu0 0
    %325 = vmatpush1.bf16.msra.mxu0 0
    %326 = vmatprep.mubr.bf16.mxu0 0
    %327 = vmatmul.mubr.bf16.gmra.mrb[0].mxu0 %v222
    %v328 = vpop.f32.mrb[0].mxu0
    %v329 = vadd.f32 %v244, %v328
    %v330 = vpop.f32.mrb[0].mxu0
    %v331 = vpop.f32.mrb[0].mxu0
    %v332 = vadd.f32 %v244, %v331
    %v333 = vpop.f32.mrb[0].mxu0
    %334 = vdwg.mxu0
    %335 = vst.msk [vmem:[#allocation5] sm:$0xff] %vm60, %v329
    %336 = vst.msk [vmem:[#allocation5 + $0x8] sm:$0xff] %vm60, %v332
    // Predicated region
    $region34: #{tpu_custom_call.1} parent=1 // pred_check
      _
    $region35: #{tpu_custom_call.1} parent=1 // pred_check_branch
      %338 = sbr.rel (0) target = $region37
    $region36: #{tpu_custom_call.1} parent=1 // pred_region
      %s340 = ssub.s32 256, 256
      %341 = vsyncadd [#allocation4], %s340
      %s342 = sshll.u32 [#allocation5], 4
      %s343 = int_to_ptr.vmem [resolvable:$true] %s342
      %348 = dma.vmem_to_hbm [thread:$0]  %s343, 256, %s7, [#allocation4], 128, 128, 8
    $region37: #{tpu_custom_call.1} parent=1 // pred_fallthru
      _
    // Predicated region
    $region38: #{tpu_custom_call.1} parent=1 // pred_check
      _
    $region39: #{tpu_custom_call.1} parent=1 // pred_check_branch
      %350 = sbr.rel (0) target = $region41
    $region40: #{tpu_custom_call.1} parent=1 // pred_region
      %351 = dma.done [#allocation4], 256
    $region41: #{tpu_custom_call.1} parent=1 // pred_fallthru
      _
    %352 = vsyncpa [#allocation3], 1
    %353 = vsyncpa [#allocation4], 1

</llo_original>
